<compile_context>
chip_gen: v6e
topology: v6e:2x2x1
jax: 0.10.0
libtpu: 0.0.40
codegen_flags: <defaults>
</compile_context>

<pallas_src>
import jax
import jax.numpy as jnp
from jax.experimental import pallas as pl
from jax.experimental.pallas import tpu as pltpu


def shallow_exp_kernel(xt_ref, cent_ref, cca_ref, c_ref, o_ref):
    # xt_ref:   (d, TN)  input tile, batch on lanes
    # cent_ref: (m, d)   RBF centers (rows of b)
    # cca_ref:  (m, 2)   col 0: ||cent_j||^2, col 1: -(w_j^2)  (hoisted consts)
    # c_ref:    (1, m)   output weights
    # o_ref:    (1, TN)  lane-dense output tile
    xt = xt_ref[...]                       # (d, TN) f32
    cent = cent_ref[...]                   # (m, d)
    cca = cca_ref[...]                     # (m, 2)
    cc = cca[:, 0:1]                       # (m, 1)  ||cent_j||^2
    alpha = cca[:, 1:2]                    # (m, 1)  -(w_j^2)
    c = c_ref[...]                         # (1, m)

    # ||x_n - cent_j||^2 = ||x_n||^2 - 2 <cent_j, x_n> + ||cent_j||^2
    xx = jnp.sum(xt * xt, axis=0, keepdims=True)                      # (1, TN)
    xc = jnp.dot(cent, xt, preferred_element_type=jnp.float32)        # (m, TN) MXU
    dist = jnp.maximum(xx - 2.0 * xc + cc, 0.0)                       # (m, TN)
    e = jnp.exp(alpha * dist)                                         # (m, TN) EUP
    # Weighted sum over the m centers on the MXU -> lane-dense (1, TN) store.
    o_ref[...] = jnp.dot(c, e, preferred_element_type=jnp.float32)    # (1, TN)


def shallow_exp(x, theta, d, m, tile_n=512):
    assert d == m, "PyTorch forward broadcast requires d == m"
    N = x.shape[0]

    # splitter()
    c = theta[:m].reshape(1, m).astype(jnp.float32)
    b = theta[m:m + m * d].reshape(d, m).astype(jnp.float32)
    w = theta[m + m * d:].astype(jnp.float32)
    cent = b                                                # rows of b = centers

    # Hoist grid-invariant per-center constants out of the kernel loop.
    cc = jnp.sum(cent * cent, axis=1, keepdims=True)        # (m, 1)
    alpha = -(w * w).reshape(m, 1)                          # (m, 1)
    cc_alpha = jnp.concatenate([cc, alpha], axis=1)         # (m, 2)

    # Batch on the lane axis; pad N so every tile is full and lane-dense.
    tile_n = max(128, (int(tile_n) // 128) * 128)
    n_min = ((N + 127) // 128) * 128
    tile_n = min(tile_n, n_min)
    n_pad = ((N + tile_n - 1) // tile_n) * tile_n
    xt = jnp.zeros((d, n_pad), jnp.float32).at[:, :N].set(
        x.astype(jnp.float32).T)

    out = pl.pallas_call(
        shallow_exp_kernel,
        out_shape=jax.ShapeDtypeStruct((1, n_pad), jnp.float32),
        grid_spec=pltpu.PrefetchScalarGridSpec(
            num_scalar_prefetch=0,
            grid=(n_pad // tile_n,),
            in_specs=[
                pl.BlockSpec((d, tile_n), lambda i: (0, i)),
                pl.BlockSpec((m, d), lambda i: (0, 0)),
                pl.BlockSpec((m, 2), lambda i: (0, 0)),
                pl.BlockSpec((1, m), lambda i: (0, 0)),
            ],
            out_specs=pl.BlockSpec((1, tile_n), lambda i: (0, i)),
        ),
        compiler_params=pltpu.CompilerParams(
            dimension_semantics=("parallel",)),
    )(xt, cent, cc_alpha, c)
    return out[0, :N]


def shallow_exp_ref(x, theta, d, m):
    """Pure-JAX transcription of the PyTorch forward (d == m)."""
    c = theta[:m]
    b = theta[m:m + m * d].reshape(d, m)
    w = theta[m + m * d:]
    diff = x[:, :, None] - b.T[None, :, :]             # (N, d, 1) - (1, m, d)
    distance = jnp.sum(diff * diff, axis=1)            # (N, m)
    exp_factor = jnp.exp(-(w[None, :] ** 2) * distance)
    return jnp.sum(c[None, :] * exp_factor, axis=1)


if __name__ == "__main__":
    d = 16
    m = 16          # must equal d for the original forward to broadcast
    N = 16

    key = jax.random.PRNGKey(0)
    kx, kt = jax.random.split(key)
    x = jax.random.normal(kx, (N, d), dtype=jnp.float32)
    # theta ~ U[0,1), same distribution as torch.rand(2*m + m*d)
    theta = jax.random.uniform(kt, (2 * m + m * d,), dtype=jnp.float32)

    y = shallow_exp(x, theta, d, m)
    y = jax.block_until_ready(y)

    y_ref = shallow_exp_ref(x, theta, d, m)
    assert y.shape == (N,)
    assert jnp.allclose(y, y_ref, atol=1e-5, rtol=1e-5)
    print("KERNEL_OK")
</pallas_src>

<mosaic_0001>
module attributes {stable_mosaic.version = 11 : i64} {
  func.func @shallow_exp_kernel(%arg0: i32, %arg1: memref<16x128xf32, #tpu.memory_space<vmem>>, %arg2: memref<16x16xf32, #tpu.memory_space<vmem>>, %arg3: memref<16x2xf32, #tpu.memory_space<vmem>>, %arg4: memref<1x16xf32, #tpu.memory_space<vmem>>, %arg5: memref<1x128xf32, #tpu.memory_space<vmem>>) attributes {dimension_semantics = [#tpu.dimension_semantics<parallel>], iteration_bounds = array<i64: 1>, scalar_prefetch = 0 : i64, scratch_operands = 0 : i64, tpu.core_type = #tpu.core_type<tc>, window_params = [{transform_indices = @transform_0, window_bounds = array<i64: 16, 128>}, {pipeline_mode = #tpu.pipeline_mode<synchronous>, transform_indices = @transform_1, window_bounds = array<i64: 16, 16>}, {pipeline_mode = #tpu.pipeline_mode<synchronous>, transform_indices = @transform_2, window_bounds = array<i64: 16, 2>}, {pipeline_mode = #tpu.pipeline_mode<synchronous>, transform_indices = @transform_3, window_bounds = array<i64: 1, 16>}, {transform_indices = @transform_4, window_bounds = array<i64: 1, 128>}]} {
    %c0 = arith.constant 0 : index
    %c0_0 = arith.constant 0 : index
    %0 = vector.load %arg1[%c0, %c0_0] : memref<16x128xf32, #tpu.memory_space<vmem>>, vector<16x128xf32>
    %c0_1 = arith.constant 0 : index
    %c0_2 = arith.constant 0 : index
    %1 = vector.load %arg2[%c0_1, %c0_2] : memref<16x16xf32, #tpu.memory_space<vmem>>, vector<16x16xf32>
    %c0_3 = arith.constant 0 : index
    %c0_4 = arith.constant 0 : index
    %2 = vector.load %arg3[%c0_3, %c0_4] : memref<16x2xf32, #tpu.memory_space<vmem>>, vector<16x2xf32>
    %3 = vector.extract_strided_slice %2 {offsets = [0, 0], sizes = [16, 1], strides = [1, 1]} : vector<16x2xf32> to vector<16x1xf32>
    %4 = vector.extract_strided_slice %2 {offsets = [0, 1], sizes = [16, 1], strides = [1, 1]} : vector<16x2xf32> to vector<16x1xf32>
    %c0_5 = arith.constant 0 : index
    %c0_6 = arith.constant 0 : index
    %5 = vector.load %arg4[%c0_5, %c0_6] : memref<1x16xf32, #tpu.memory_space<vmem>>, vector<1x16xf32>
    %6 = arith.mulf %0, %0 : vector<16x128xf32>
    %cst = arith.constant dense<0.000000e+00> : vector<128xf32>
    %7 = vector.multi_reduction <add>, %6, %cst [0] : vector<16x128xf32> to vector<128xf32>
    %8 = vector.shape_cast %7 : vector<128xf32> to vector<1x128xf32>
    %cst_7 = arith.constant dense<0.000000e+00> : vector<16x128xf32>
    %9 = tpu.matmul %1, %0, %cst_7 {dimension_numbers = #tpu.dot_dimension_numbers<[1], [0], [0], [1], [0, 0, 1, 1], [], []>} : vector<16x16xf32>, vector<16x128xf32>, vector<16x128xf32> -> vector<16x128xf32>
    %cst_8 = arith.constant 2.000000e+00 : f32
    %10 = vector.broadcast %cst_8 : f32 to vector<16x128xf32>
    %11 = arith.mulf %10, %9 : vector<16x128xf32>
    %12 = vector.broadcast %8 : vector<1x128xf32> to vector<16x128xf32>
    %13 = arith.subf %12, %11 : vector<16x128xf32>
    %14 = vector.broadcast %3 : vector<16x1xf32> to vector<16x128xf32>
    %15 = arith.addf %13, %14 : vector<16x128xf32>
    %cst_9 = arith.constant 0.000000e+00 : f32
    %16 = vector.broadcast %cst_9 : f32 to vector<16x128xf32>
    %17 = arith.maximumf %15, %16 : vector<16x128xf32>
    %18 = vector.broadcast %4 : vector<16x1xf32> to vector<16x128xf32>
    %19 = arith.mulf %18, %17 : vector<16x128xf32>
    %20 = math.exp %19 : vector<16x128xf32>
    %cst_10 = arith.constant dense<0.000000e+00> : vector<1x128xf32>
    %21 = tpu.matmul %5, %20, %cst_10 {dimension_numbers = #tpu.dot_dimension_numbers<[1], [0], [0], [1], [0, 0, 1, 1], [], []>} : vector<1x16xf32>, vector<16x128xf32>, vector<1x128xf32> -> vector<1x128xf32>
    %c0_11 = arith.constant 0 : index
    %c0_12 = arith.constant 0 : index
    %22 = vector.load %arg5[%c0_11, %c0_12] : memref<1x128xf32, #tpu.memory_space<vmem>>, vector<1x128xf32>
    tpu.vector_store %arg5[%c0_11, %c0_12], %21 {strides = array<i32>} : memref<1x128xf32, #tpu.memory_space<vmem>>, vector<1x128xf32>,
    return
  }
  func.func @transform_0(%arg0: i32) -> (i32, i32) {
    %c0_i32 = arith.constant 0 : i32
    %c0_i32_0 = arith.constant 0 : i32
    return %c0_i32, %arg0 : i32, i32
  }
  func.func @transform_1(%arg0: i32) -> (i32, i32) {
    %c0_i32 = arith.constant 0 : i32
    %c0_i32_0 = arith.constant 0 : i32
    %c0_i32_1 = arith.constant 0 : i32
    return %c0_i32, %c0_i32_0 : i32, i32
  }
  func.func @transform_2(%arg0: i32) -> (i32, i32) {
    %c0_i32 = arith.constant 0 : i32
    %c0_i32_0 = arith.constant 0 : i32
    %c0_i32_1 = arith.constant 0 : i32
    return %c0_i32, %c0_i32_0 : i32, i32
  }
  func.func @transform_3(%arg0: i32) -> (i32, i32) {
    %c0_i32 = arith.constant 0 : i32
    %c0_i32_0 = arith.constant 0 : i32
    %c0_i32_1 = arith.constant 0 : i32
    return %c0_i32, %c0_i32_0 : i32, i32
  }
  func.func @transform_4(%arg0: i32) -> (i32, i32) {
    %c0_i32 = arith.constant 0 : i32
    %c0_i32_0 = arith.constant 0 : i32
    return %c0_i32, %arg0 : i32, i32
  }
}

</mosaic_0001>

<llo_original>
// kernel: tpu_custom_call.1
$region0: #{tpu_custom_call.1}
  #allocation0 [shape = 'u32[]', space=smem, size = 0x4, offset = 0x4, fixed_abs, tag = 'smem constant byte address 0x4 - core index']
  #allocation1 [shape = 'u32[144,128]{1,0:T(1,128)}', space=vmem, size = 0x12000, scoped, tag = 'internal scratch']
  %s0 = inlined_call_operand.vmem [shape: f32[16,128], index: 0, kind: input, shape index: {}]
  %s1 = inlined_call_operand.hbm [shape: f32[16,16], index: 1, kind: input, shape index: {}]
  %s2 = inlined_call_operand.vmem [shape: f32[16,2], index: 2, kind: input, shape index: {}]
  %s3 = inlined_call_operand.vmem [shape: f32[1,16], index: 3, kind: input, shape index: {}]
  %s4 = inlined_call_operand.hbm [shape: f32[1,128], index: 4, kind: output, shape index: {}]
  %s5 = sld [smem:[#allocation0]]
  $region30: #{tpu_custom_call.1} parent=0
    _
  %s7 = ssub.s32 1, %s5
  %s8 = scalar_select 0, %s7, %s5
  $region1: #{tpu_custom_call.1} parent=0
    #allocation2 [shape = 'u8[8192]{0}', space=vmem, size = 0x2000, scoped, tag = 'input window, operand 1, single buffered']
    #allocation3 [shape = 's32[1]{0}', space=sflag, size = 0x4, scoped, tag = 'scoped memory for tpu_custom_call.1']
    #allocation4 [shape = 's32[1]{0}', space=sflag, size = 0x4, scoped, tag = 'scoped memory for tpu_custom_call.1']
    #allocation5 [shape = 'u8[512]{0}', space=vmem, size = 0x400, scoped, tag = 'output window, operand 0, single buffered']
    %9 = vsyncpa [#allocation3], 0
    %10 = vsyncpa [#allocation4], 0
    // Predicated region
    $region2: #{tpu_custom_call.1} parent=1 // pred_check
      _
    $region3: #{tpu_custom_call.1} parent=1 // pred_check_branch
      %12 = sbr.rel (0) target = $region5
    $region4: #{tpu_custom_call.1} parent=1 // pred_region
      _
    $region5: #{tpu_custom_call.1} parent=1 // pred_fallthru
      _
    // Predicated region
    $region6: #{tpu_custom_call.1} parent=1 // pred_check
      _
    $region7: #{tpu_custom_call.1} parent=1 // pred_check_branch
      %14 = sbr.rel (0) target = $region9
    $region8: #{tpu_custom_call.1} parent=1 // pred_region
      %s16 = ssub.s32 256, 256
      %17 = vsyncadd [#allocation3], %s16
      %s18 = sshll.u32 [#allocation2], 4
      %s19 = int_to_ptr.vmem [resolvable:$true] %s18
      %24 = dma.hbm_to_vmem [thread:$0]  %s1, 256, %s19, [#allocation3], 128, 128, 8
    $region9: #{tpu_custom_call.1} parent=1 // pred_fallthru
      _
    // Predicated region
    $region10: #{tpu_custom_call.1} parent=1 // pred_check
      _
    $region11: #{tpu_custom_call.1} parent=1 // pred_check_branch
      %26 = sbr.rel (0) target = $region13
    $region12: #{tpu_custom_call.1} parent=1 // pred_region
      _
    $region13: #{tpu_custom_call.1} parent=1 // pred_fallthru
      _
    // Predicated region
    $region14: #{tpu_custom_call.1} parent=1 // pred_check
      _
    $region15: #{tpu_custom_call.1} parent=1 // pred_check_branch
      %28 = sbr.rel (0) target = $region17
    $region16: #{tpu_custom_call.1} parent=1 // pred_region
      _
    $region17: #{tpu_custom_call.1} parent=1 // pred_fallthru
      _
    // Predicated region
    $region18: #{tpu_custom_call.1} parent=1 // pred_check
      _
    $region19: #{tpu_custom_call.1} parent=1 // pred_check_branch
      %30 = sbr.rel (0) target = $region21
    $region20: #{tpu_custom_call.1} parent=1 // pred_region
      %31 = dma.done [#allocation3], 256
    $region21: #{tpu_custom_call.1} parent=1 // pred_fallthru
      _
    %v32 = vld [vmem:[%s0] sm:$0xff]
    %v33 = vld [vmem:[%s0 + $0x8] sm:$0xff]
    %v34 = vld [vmem:[#allocation2] sm:$0xff]
    %v35 = vld [vmem:[#allocation2 + $0x8] sm:$0xff]
    %v36 = vld [vmem:[%s2] sm:$0xff]
    %v37 = vld [vmem:[%s2 + $0x8] sm:$0xff]
    %v38 = vld [vmem:[%s3] sm:$0x1]
    %v39 = vmul.f32 %v32, %v32
    %v40 = vmul.f32 %v33, %v33
    %v41 = vadd.f32 %v39, %v40
    %v42 = vrot.slane %v41, 4
    %v43 = vadd.f32 %v41, %v42
    %v44 = vrot.slane %v43, 2
    %v45 = vadd.f32 %v43, %v44
    %v46 = vrot.slane %v45, 1
    %v47 = vadd.f32 %v45, %v46
    %vm48 = vcmask 130048
    %v50 = vsel %vm48, %v34, 0
    %v53 = vsel %vm48, %v35, 0
    %55 = vmatprep.subr.mxu0 0.0
    %56 = vmatpush1.msra.mxu0 0.0
    %57 = vmatprep.subr.mxu0 0.0
    %58 = vmatpush1.msra.mxu0 0.0
    %59 = vmatprep.subr.mxu0 0.0
    %60 = vmatpush1.msra.mxu0 0.0
    %61 = vmatprep.subr.mxu0 0.0
    %62 = vmatpush1.msra.mxu0 0.0
    %63 = vmatprep.subr.mxu0 0.0
    %64 = vmatpush1.msra.mxu0 0.0
    %65 = vmatprep.subr.mxu0 0.0
    %66 = vmatpush1.msra.mxu0 0.0
    %67 = vmatprep.subr.mxu0 0.0
    %68 = vmatpush1.msra.mxu0 0.0
    %69 = vmatprep.subr.mxu0 0.0
    %70 = vmatpush1.msra.mxu0 0.0
    %71 = vmatprep.subr.mxu0 0.0
    %72 = vmatpush1.msra.mxu0 0.0
    %73 = vmatprep.subr.mxu0 0.0
    %74 = vmatpush1.msra.mxu0 0.0
    %75 = vmatprep.subr.mxu0 0.0
    %76 = vmatpush1.msra.mxu0 0.0
    %77 = vmatprep.subr.mxu0 0.0
    %78 = vmatpush1.msra.mxu0 0.0
    %79 = vmatprep.subr.mxu0 0.0
    %80 = vmatpush1.msra.mxu0 0.0
    %81 = vmatprep.subr.mxu0 0.0
    %82 = vmatpush1.msra.mxu0 0.0
    %83 = vmatprep.subr.mxu0 0.0
    %84 = vmatpush1.msra.mxu0 %v33
    %85 = vmatprep.subr.mxu0 0.0
    %86 = vmatpush1.msra.mxu0 %v32
    %87 = vmatprep.subr.mxu0 0.0
    %88 = vmatpush2.msra.mxu0 0.0
    %89 = vmatprep.subr.mxu0 0.0
    %90 = vmatpush2.msra.mxu0 0.0
    %91 = vmatprep.subr.mxu0 0.0
    %92 = vmatpush2.msra.mxu0 0.0
    %93 = vmatprep.subr.mxu0 0.0
    %94 = vmatpush2.msra.mxu0 0.0
    %95 = vmatprep.subr.mxu0 0.0
    %96 = vmatpush2.msra.mxu0 0.0
    %97 = vmatprep.subr.mxu0 0.0
    %98 = vmatpush2.msra.mxu0 0.0
    %99 = vmatprep.subr.mxu0 0.0
    %100 = vmatpush2.msra.mxu0 0.0
    %101 = vmatprep.subr.mxu0 0.0
    %102 = vmatpush2.msra.mxu0 0.0
    %103 = vmatprep.subr.mxu0 0.0
    %104 = vmatpush2.msra.mxu0 0.0
    %105 = vmatprep.subr.mxu0 0.0
    %106 = vmatpush2.msra.mxu0 0.0
    %107 = vmatprep.subr.mxu0 0.0
    %108 = vmatpush2.msra.mxu0 0.0
    %109 = vmatprep.subr.mxu0 0.0
    %110 = vmatpush2.msra.mxu0 0.0
    %111 = vmatprep.subr.mxu0 0.0
    %112 = vmatpush2.msra.mxu0 0.0
    %113 = vmatprep.subr.mxu0 0.0
    %114 = vmatpush2.msra.mxu0 0.0
    %115 = vmatprep.subr.mxu0 0.0
    %116 = vmatpush2.msra.mxu0 0.0
    %117 = vmatprep.subr.mxu0 0.0
    %118 = vmatpush2.msra.mxu0 0.0
    %119 = vmatprep.mubr.f32.mxu0 0.0
    %120 = vmatmul.mubr.f32.gmra.mxu0 %v50
    %v121 = vpop.f32.mrf.mxu0
    %v122 = vadd.f32 0.0, %v121
    %v123 = vpop.f32.mrf.mxu0
    %124 = vmatprep.mubr.f32.mxu0 0.0
    %125 = vmatmul.mubr.f32.gmra.mxu0 %v53
    %v126 = vpop.f32.mrf.mxu0
    %v127 = vadd.f32 0.0, %v126
    %v128 = vpop.f32.mrf.mxu0
    %129 = vdwg.mxu0
    %v130 = vmul.f32 %v122, 2.0
    %v131 = vmul.f32 %v127, 2.0
    %v132 = vsub.f32 %v47, %v130
    %v133 = vsub.f32 %v47, %v131
    %135 = vset.pattern.permute.xlu0 0
    %136 = vperm.xlu0 %135, %v36
    %v137 = vpop.permute.xlu0 %136
    %140 = vset.pattern.permute.xlu0 0
    %141 = vperm.xlu0 %140, %v37
    %v142 = vpop.permute.xlu0 %141
    %v144 = vadd.f32 %v132, %v137
    %v145 = vadd.f32 %v133, %v142
    %v146 = vmax.f32 %v144, 0.0
    %v147 = vmax.f32 %v145, 0.0
    %148 = vset.pattern.permute.xlu0 1
    %149 = vperm.xlu0 %148, %v36
    %v150 = vpop.permute.xlu0 %149
    %152 = vset.pattern.permute.xlu0 1
    %153 = vperm.xlu0 %152, %v37
    %v154 = vpop.permute.xlu0 %153
    %v156 = vmul.f32 %v150, %v146
    %v157 = vmul.f32 %v154, %v147
    %v158 = vmul.f32 %v156, 1.442695
    %v159 = vpow.pop %v158
    %v160 = vmul.f32 %v157, 1.442695
    %v161 = vpow.pop %v160
    %v163 = vsel %vm48, %v38, 0
    %165 = vmatprep.subr.mxu0 0.0
    %166 = vmatpush1.msra.mxu0 0.0
    %167 = vmatprep.subr.mxu0 0.0
    %168 = vmatpush1.msra.mxu0 0.0
    %169 = vmatprep.subr.mxu0 0.0
    %170 = vmatpush1.msra.mxu0 0.0
    %171 = vmatprep.subr.mxu0 0.0
    %172 = vmatpush1.msra.mxu0 0.0
    %173 = vmatprep.subr.mxu0 0.0
    %174 = vmatpush1.msra.mxu0 0.0
    %175 = vmatprep.subr.mxu0 0.0
    %176 = vmatpush1.msra.mxu0 0.0
    %177 = vmatprep.subr.mxu0 0.0
    %178 = vmatpush1.msra.mxu0 0.0
    %179 = vmatprep.subr.mxu0 0.0
    %180 = vmatpush1.msra.mxu0 0.0
    %181 = vmatprep.subr.mxu0 0.0
    %182 = vmatpush1.msra.mxu0 0.0
    %183 = vmatprep.subr.mxu0 0.0
    %184 = vmatpush1.msra.mxu0 0.0
    %185 = vmatprep.subr.mxu0 0.0
    %186 = vmatpush1.msra.mxu0 0.0
    %187 = vmatprep.subr.mxu0 0.0
    %188 = vmatpush1.msra.mxu0 0.0
    %189 = vmatprep.subr.mxu0 0.0
    %190 = vmatpush1.msra.mxu0 0.0
    %191 = vmatprep.subr.mxu0 0.0
    %192 = vmatpush1.msra.mxu0 0.0
    %193 = vmatprep.subr.mxu0 0.0
    %194 = vmatpush1.msra.mxu0 %v161
    %195 = vmatprep.subr.mxu0 0.0
    %196 = vmatpush1.msra.mxu0 %v159
    %197 = vmatprep.subr.mxu0 0.0
    %198 = vmatpush2.msra.mxu0 0.0
    %199 = vmatprep.subr.mxu0 0.0
    %200 = vmatpush2.msra.mxu0 0.0
    %201 = vmatprep.subr.mxu0 0.0
    %202 = vmatpush2.msra.mxu0 0.0
    %203 = vmatprep.subr.mxu0 0.0
    %204 = vmatpush2.msra.mxu0 0.0
    %205 = vmatprep.subr.mxu0 0.0
    %206 = vmatpush2.msra.mxu0 0.0
    %207 = vmatprep.subr.mxu0 0.0
    %208 = vmatpush2.msra.mxu0 0.0
    %209 = vmatprep.subr.mxu0 0.0
    %210 = vmatpush2.msra.mxu0 0.0
    %211 = vmatprep.subr.mxu0 0.0
    %212 = vmatpush2.msra.mxu0 0.0
    %213 = vmatprep.subr.mxu0 0.0
    %214 = vmatpush2.msra.mxu0 0.0
    %215 = vmatprep.subr.mxu0 0.0
    %216 = vmatpush2.msra.mxu0 0.0
    %217 = vmatprep.subr.mxu0 0.0
    %218 = vmatpush2.msra.mxu0 0.0
    %219 = vmatprep.subr.mxu0 0.0
    %220 = vmatpush2.msra.mxu0 0.0
    %221 = vmatprep.subr.mxu0 0.0
    %222 = vmatpush2.msra.mxu0 0.0
    %223 = vmatprep.subr.mxu0 0.0
    %224 = vmatpush2.msra.mxu0 0.0
    %225 = vmatprep.subr.mxu0 0.0
    %226 = vmatpush2.msra.mxu0 0.0
    %227 = vmatprep.subr.mxu0 0.0
    %228 = vmatpush2.msra.mxu0 0.0
    %229 = vmatprep.mubr.f32.mxu0 0.0
    %230 = vmatmul.mubr.f32.gmra.mxu0 %v163
    %v231 = vpop.f32.mrf.mxu0
    %v232 = vadd.f32 0.0, %v231
    %v233 = vpop.f32.mrf.mxu0
    %234 = vdwg.mxu0
    %235 = vst [vmem:[#allocation5] sm:$0x1] %v232
    // Predicated region
    $region22: #{tpu_custom_call.1} parent=1 // pred_check
      _
    $region23: #{tpu_custom_call.1} parent=1 // pred_check_branch
      %237 = sbr.rel (0) target = $region25
    $region24: #{tpu_custom_call.1} parent=1 // pred_region
      %s239 = ssub.s32 16, 16
      %240 = vsyncadd [#allocation4], %s239
      %s242 = sshll.u32 [#allocation5], 4
      %s243 = int_to_ptr.vmem [resolvable:$true] %s242
      %245 = dma.vmem_to_hbm [thread:$0]  %s243, 16, %s4, [#allocation4]
    $region25: #{tpu_custom_call.1} parent=1 // pred_fallthru
      _
    // Predicated region
    $region26: #{tpu_custom_call.1} parent=1 // pred_check
      _
    $region27: #{tpu_custom_call.1} parent=1 // pred_check_branch
      %247 = sbr.rel (0) target = $region29
    $region28: #{tpu_custom_call.1} parent=1 // pred_region
      %248 = dma.done [#allocation4], 16
    $region29: #{tpu_custom_call.1} parent=1 // pred_fallthru
      _
    %249 = vsyncpa [#allocation3], 1
    %250 = vsyncpa [#allocation4], 1

</llo_original>
